<compile_context>
chip_gen: v5e
topology: v5e:2x2
jax: 0.10.0
libtpu: 0.0.40
codegen_flags: <defaults>
</compile_context>

<pallas_src>
import functools

import jax
import jax.numpy as jnp
import numpy as np
from jax import lax
from jax.experimental import pallas as pl
from jax.experimental.pallas import tpu as pltpu

EXPANSION = 4
BN_EPS = 1e-5

# Dtype fed to the MXU.  float32 keeps full precision for the correctness
# check; set to jnp.bfloat16 on v6e/v7x for full-rate MXU and a halved VMEM
# footprint of the 9-tap stack (effectively mandatory at real sizes on v7x).
MXU_DTYPE = jnp.float32


def _round_up(v, m):
    return (v + m - 1) // m * m


# ---------------------------------------------------------------------------
# Stage A: fused 1x1 conv1 + 1x1 projection-shortcut conv, per-image BN partials
# ---------------------------------------------------------------------------
def _stage_a_kernel(x_ref, wcat_ref, h1_ref, sc_ref, s_ref, q_ref):
    # x_ref: (Cin, Sp), wcat_ref: (P + Cout, Cin)
    y = jnp.dot(wcat_ref[...].astype(MXU_DTYPE), x_ref[...].astype(MXU_DTYPE),
                preferred_element_type=jnp.float32)            # (P+Cout, Sp)
    p = h1_ref.shape[0]
    h1_ref[...] = y[:p]
    sc_ref[...] = y[p:]
    # Padded lanes of x are zero -> y is zero there -> sums are exact over NHW.
    s_ref[...] = jnp.sum(y, axis=1, keepdims=True)
    q_ref[...] = jnp.sum(y * y, axis=1, keepdims=True)


# ---------------------------------------------------------------------------
# Stage B: bn1 + relu + 3x3 conv2 via stacked-tap single matmul, bn2 partials
# ---------------------------------------------------------------------------
def _stage_b_kernel(h1p_ref, sc1_ref, sh1_ref, mask_ref, w2r_ref,
                    acc_ref, s_ref, q_ref, *, Wp):
    h1 = jnp.maximum(h1p_ref[...] * sc1_ref[...] + sh1_ref[...], 0.0)
    h1 = h1 * mask_ref[...]            # re-zero pad lanes: exact zero-pad conv
    _, Sp = h1.shape
    taps = []
    for ky in range(3):
        for kx in range(3):
            k = (ky - 1) * Wp + (kx - 1)        # shifted[:, p] = h1[:, p + k]
            taps.append(h1 if k == 0 else pltpu.roll(h1, shift=(-k) % Sp, axis=1))
    tap = jnp.concatenate(taps, axis=0)                         # (9P, Sp)
    acc = jnp.dot(w2r_ref[...].astype(MXU_DTYPE), tap.astype(MXU_DTYPE),
                  preferred_element_type=jnp.float32)           # (P, Sp)
    acc = acc * mask_ref[...]          # pad lanes -> 0 so bn2 stats stay exact
    acc_ref[...] = acc
    s_ref[...] = jnp.sum(acc, axis=1, keepdims=True)
    q_ref[...] = jnp.sum(acc * acc, axis=1, keepdims=True)


# ---------------------------------------------------------------------------
# Stage C: bn2 + relu + 1x1 conv3, bn3 partials
# ---------------------------------------------------------------------------
def _stage_c_kernel(acc_ref, sc2_ref, sh2_ref, mask_ref, w3_ref,
                    h3_ref, s_ref, q_ref):
    h2 = jnp.maximum(acc_ref[...] * sc2_ref[...] + sh2_ref[...], 0.0)
    h2 = h2 * mask_ref[...]            # keep pad lanes at zero for bn3 stats
    h3 = jnp.dot(w3_ref[...].astype(MXU_DTYPE), h2.astype(MXU_DTYPE),
                 preferred_element_type=jnp.float32)            # (Cout, Sp)
    h3_ref[...] = h3
    s_ref[...] = jnp.sum(h3, axis=1, keepdims=True)
    q_ref[...] = jnp.sum(h3 * h3, axis=1, keepdims=True)


# ---------------------------------------------------------------------------
# Stage D: bn3 + bn_shortcut + residual add + relu
# ---------------------------------------------------------------------------
def _stage_d_kernel(h3_ref, scp_ref, sc3_ref, sh3_ref, scs_ref, shs_ref, out_ref):
    main = h3_ref[...] * sc3_ref[...] + sh3_ref[...]
    shortcut = scp_ref[...] * scs_ref[...] + shs_ref[...]
    out_ref[...] = jnp.maximum(main + shortcut, 0.0)


# ---------------------------------------------------------------------------
# Host wrapper
# ---------------------------------------------------------------------------
def bottleneck_forward(x_nchw, params, *, planes, stride=1):
    assert stride == 1, "this kernel instance implements stride=1 only"
    N, Cin, H, W = x_nchw.shape
    Cout = planes * EXPANSION
    assert Cin != Cout, "this instance exercises the projection shortcut"
    P = planes
    Pc = P + Cout
    Hp, Wp = H + 2, W + 2
    S = Hp * Wp
    Sp = _round_up(S, 128)          # lane-dense slab width
    NHW = N * H * W                 # valid-pixel count (BN divisor)
    f32 = jnp.float32

    # ---- layout glue: NCHW -> zero-padded (N, C, Sp) slabs -----------------
    xp = jnp.pad(x_nchw.astype(f32), ((0, 0), (0, 0), (1, 1), (1, 1)))
    xp = xp.reshape(N, Cin, S)
    xp = jnp.pad(xp, ((0, 0), (0, 0), (0, Sp - S)))

    interior = jnp.zeros((Hp, Wp), f32).at[1:H + 1, 1:W + 1].set(1.0).reshape(S)
    mask = jnp.zeros((1, Sp), f32).at[0, :S].set(interior)

    # ---- weights ------------------------------------------------------------
    w1 = params["conv1_w"].reshape(P, Cin).astype(f32)
    wsc = params["sc_conv_w"].reshape(Cout, Cin).astype(f32)
    wcat = jnp.concatenate([w1, wsc], axis=0)                   # (P+Cout, Cin)
    # OIHW -> (O, ky, kx, I) -> (O, 9*I); tap order matches the kernel loop.
    w2r = jnp.transpose(params["conv2_w"].astype(f32), (0, 2, 3, 1)).reshape(P, 9 * P)
    w3 = params["conv3_w"].reshape(Cout, P).astype(f32)

    # ---- block specs --------------------------------------------------------
    def img_spec(c):
        return pl.BlockSpec((None, c, Sp), lambda n: (n, 0, 0))

    def stat_spec(c):
        return pl.BlockSpec((None, c, 1), lambda n: (n, 0, 0))

    def rep_spec(shape):                # untiled (weights / BN params / mask)
        nd = len(shape)
        return pl.BlockSpec(shape, lambda n, nd=nd: (0,) * nd)

    cparams = pltpu.CompilerParams(
        dimension_semantics=("parallel",),       # megacore-shard over images
        vmem_limit_bytes=64 * 1024 * 1024)

    act = lambda c: jax.ShapeDtypeStruct((N, c, Sp), f32)
    stat = lambda c: jax.ShapeDtypeStruct((N, c, 1), f32)

    # ---- stage A: conv1 + shortcut conv, bn1/bn_sc partial stats -----------
    h1_pre, sc_pre, a_sum, a_sq = pl.pallas_call(
        _stage_a_kernel,
        grid=(N,),
        in_specs=[img_spec(Cin), rep_spec((Pc, Cin))],
        out_specs=(img_spec(P), img_spec(Cout), stat_spec(Pc), stat_spec(Pc)),
        out_shape=(act(P), act(Cout), stat(Pc), stat(Pc)),
        compiler_params=cparams,
        cost_estimate=pl.CostEstimate(
            flops=2 * N * Sp * Pc * Cin, transcendentals=0,
            bytes_accessed=4 * N * Sp * (Cin + Pc)),
    )(xp, wcat)

    def bn_affine(s, q, gamma, beta):
        # Fold global batch stats into per-channel scale/shift (off the hot slab).
        s = jnp.sum(s, axis=0)                   # (C, 1)
        q = jnp.sum(q, axis=0)
        mean = s / NHW
        var = q / NHW - mean * mean              # biased (training-mode) variance
        scale = gamma.reshape(-1, 1).astype(f32) * lax.rsqrt(var + BN_EPS)
        shift = beta.reshape(-1, 1).astype(f32) - mean * scale
        return scale, shift

    sc1, sh1 = bn_affine(a_sum[:, :P], a_sq[:, :P], params["bn1_g"], params["bn1_b"])
    scs, shs = bn_affine(a_sum[:, P:], a_sq[:, P:], params["sc_bn_g"], params["sc_bn_b"])

    # ---- stage B: bn1 + relu + 3x3 conv2, bn2 partial stats ----------------
    acc, b_sum, b_sq = pl.pallas_call(
        functools.partial(_stage_b_kernel, Wp=Wp),
        grid=(N,),
        in_specs=[img_spec(P), rep_spec((P, 1)), rep_spec((P, 1)),
                  rep_spec((1, Sp)), rep_spec((P, 9 * P))],
        out_specs=(img_spec(P), stat_spec(P), stat_spec(P)),
        out_shape=(act(P), stat(P), stat(P)),
        compiler_params=cparams,
        cost_estimate=pl.CostEstimate(
            flops=2 * N * Sp * P * 9 * P, transcendentals=0,
            bytes_accessed=4 * N * Sp * 2 * P),
    )(h1_pre, sc1, sh1, mask, w2r)

    sc2, sh2 = bn_affine(b_sum, b_sq, params["bn2_g"], params["bn2_b"])

    # ---- stage C: bn2 + relu + conv3, bn3 partial stats --------------------
    h3_pre, c_sum, c_sq = pl.pallas_call(
        _stage_c_kernel,
        grid=(N,),
        in_specs=[img_spec(P), rep_spec((P, 1)), rep_spec((P, 1)),
                  rep_spec((1, Sp)), rep_spec((Cout, P))],
        out_specs=(img_spec(Cout), stat_spec(Cout), stat_spec(Cout)),
        out_shape=(act(Cout), stat(Cout), stat(Cout)),
        compiler_params=cparams,
        cost_estimate=pl.CostEstimate(
            flops=2 * N * Sp * Cout * P, transcendentals=0,
            bytes_accessed=4 * N * Sp * (P + 2 * Cout)),
    )(acc, sc2, sh2, mask, w3)

    sc3, sh3 = bn_affine(c_sum, c_sq, params["bn3_g"], params["bn3_b"])

    # ---- stage D: bn3 + bn_sc + residual add + relu ------------------------
    out_p = pl.pallas_call(
        _stage_d_kernel,
        grid=(N,),
        in_specs=[img_spec(Cout), img_spec(Cout),
                  rep_spec((Cout, 1)), rep_spec((Cout, 1)),
                  rep_spec((Cout, 1)), rep_spec((Cout, 1))],
        out_specs=img_spec(Cout),
        out_shape=act(Cout),
        compiler_params=cparams,
        cost_estimate=pl.CostEstimate(
            flops=4 * N * Sp * Cout, transcendentals=0,
            bytes_accessed=4 * N * Sp * 3 * Cout),
    )(h3_pre, sc_pre, sc3, sh3, scs, shs)

    # (N, Cout, Sp) -> NCHW interior pixels
    return out_p[:, :, :S].reshape(N, Cout, Hp, Wp)[:, :, 1:H + 1, 1:W + 1]


# ---------------------------------------------------------------------------
# Pure-JAX/XLA reference mirroring the PyTorch forward (training-mode BN)
# ---------------------------------------------------------------------------
def reference_forward(x, params, *, stride=1):
    def conv(h, w, s=1, pad=0):
        return lax.conv_general_dilated(
            h, w, window_strides=(s, s), padding=[(pad, pad), (pad, pad)],
            dimension_numbers=("NCHW", "OIHW", "NCHW"),
            precision=lax.Precision.HIGHEST)

    def bn(h, g, b):
        mean = jnp.mean(h, axis=(0, 2, 3), keepdims=True)
        var = jnp.mean(jnp.square(h - mean), axis=(0, 2, 3), keepdims=True)
        return ((h - mean) * (g.reshape(1, -1, 1, 1) / jnp.sqrt(var + BN_EPS))
                + b.reshape(1, -1, 1, 1))

    out = jax.nn.relu(bn(conv(x, params["conv1_w"]),
                         params["bn1_g"], params["bn1_b"]))
    out = jax.nn.relu(bn(conv(out, params["conv2_w"], s=stride, pad=1),
                         params["bn2_g"], params["bn2_b"]))
    out = bn(conv(out, params["conv3_w"]), params["bn3_g"], params["bn3_b"])
    sc = bn(conv(x, params["sc_conv_w"], s=stride),
            params["sc_bn_g"], params["sc_bn_b"])
    return jax.nn.relu(out + sc)


if __name__ == "__main__":
    N, in_planes, planes, H, W = 2, 8, 8, 16, 16
    cout = planes * EXPANSION

    key = jax.random.PRNGKey(0)
    ks = jax.random.split(key, 13)
    params = {
        "conv1_w": jax.random.normal(ks[0], (planes, in_planes, 1, 1), jnp.float32) * 0.2,
        "bn1_g": jax.random.uniform(ks[1], (planes,), jnp.float32, 0.5, 1.5),
        "bn1_b": jax.random.normal(ks[2], (planes,), jnp.float32) * 0.1,
        "conv2_w": jax.random.normal(ks[3], (planes, planes, 3, 3), jnp.float32) * 0.2,
        "bn2_g": jax.random.uniform(ks[4], (planes,), jnp.float32, 0.5, 1.5),
        "bn2_b": jax.random.normal(ks[5], (planes,), jnp.float32) * 0.1,
        "conv3_w": jax.random.normal(ks[6], (cout, planes, 1, 1), jnp.float32) * 0.2,
        "bn3_g": jax.random.uniform(ks[7], (cout,), jnp.float32, 0.5, 1.5),
        "bn3_b": jax.random.normal(ks[8], (cout,), jnp.float32) * 0.1,
        "sc_conv_w": jax.random.normal(ks[9], (cout, in_planes, 1, 1), jnp.float32) * 0.2,
        "sc_bn_g": jax.random.uniform(ks[10], (cout,), jnp.float32, 0.5, 1.5),
        "sc_bn_b": jax.random.normal(ks[11], (cout,), jnp.float32) * 0.1,
    }
    x = jax.random.normal(ks[12], (N, in_planes, H, W), jnp.float32)

    out = jax.block_until_ready(bottleneck_forward(x, params, planes=planes, stride=1))
    ref = jax.block_until_ready(reference_forward(x, params, stride=1))

    assert out.shape == (N, cout, H, W)
    np.testing.assert_allclose(np.asarray(out), np.asarray(ref), atol=3e-2, rtol=3e-2)
    print("KERNEL_OK")
</pallas_src>

<mosaic_0001>
module attributes {stable_mosaic.version = 11 : i64} {
  func.func @_stage_a_kernel(%arg0: i32, %arg1: memref<1x8x384xf32, #tpu.memory_space<vmem>>, %arg2: memref<40x8xf32, #tpu.memory_space<vmem>>, %arg3: memref<1x8x384xf32, #tpu.memory_space<vmem>>, %arg4: memref<1x32x384xf32, #tpu.memory_space<vmem>>, %arg5: memref<1x40x1xf32, #tpu.memory_space<vmem>>, %arg6: memref<1x40x1xf32, #tpu.memory_space<vmem>>) attributes {dimension_semantics = [#tpu.dimension_semantics<parallel>], iteration_bounds = array<i64: 2>, scalar_prefetch = 0 : i64, scratch_operands = 0 : i64, tpu.core_type = #tpu.core_type<tc>, window_params = [{transform_indices = @transform_0, window_bounds = array<i64: 1, 8, 384>}, {pipeline_mode = #tpu.pipeline_mode<synchronous>, transform_indices = @transform_1, window_bounds = array<i64: 40, 8>}, {transform_indices = @transform_2, window_bounds = array<i64: 1, 8, 384>}, {transform_indices = @transform_3, window_bounds = array<i64: 1, 32, 384>}, {transform_indices = @transform_4, window_bounds = array<i64: 1, 40, 1>}, {transform_indices = @transform_5, window_bounds = array<i64: 1, 40, 1>}]} {
    %c0 = arith.constant 0 : index
    %c0_0 = arith.constant 0 : index
    %0 = vector.load %arg2[%c0, %c0_0] : memref<40x8xf32, #tpu.memory_space<vmem>>, vector<40x8xf32>
    %c0_1 = arith.constant 0 : index
    %c0_2 = arith.constant 0 : index
    %c0_3 = arith.constant 0 : index
    %1 = vector.load %arg1[%c0_1, %c0_2, %c0_3] : memref<1x8x384xf32, #tpu.memory_space<vmem>>, vector<1x8x384xf32>
    %2 = vector.shape_cast %1 : vector<1x8x384xf32> to vector<8x384xf32>
    %cst = arith.constant dense<0.000000e+00> : vector<40x384xf32>
    %3 = tpu.matmul %0, %2, %cst {dimension_numbers = #tpu.dot_dimension_numbers<[1], [0], [0], [1], [0, 0, 1, 1], [], []>} : vector<40x8xf32>, vector<8x384xf32>, vector<40x384xf32> -> vector<40x384xf32>
    %4 = vector.extract_strided_slice %3 {offsets = [0, 0], sizes = [8, 384], strides = [1, 1]} : vector<40x384xf32> to vector<8x384xf32>
    %c0_4 = arith.constant 0 : index
    %c0_5 = arith.constant 0 : index
    %c0_6 = arith.constant 0 : index
    %5 = vector.load %arg3[%c0_4, %c0_5, %c0_6] : memref<1x8x384xf32, #tpu.memory_space<vmem>>, vector<1x8x384xf32>
    %6 = vector.shape_cast %5 : vector<1x8x384xf32> to vector<8x384xf32>
    %7 = vector.shape_cast %4 : vector<8x384xf32> to vector<1x8x384xf32>
    tpu.vector_store %arg3[%c0_4, %c0_5, %c0_6], %7 {strides = array<i32>} : memref<1x8x384xf32, #tpu.memory_space<vmem>>, vector<1x8x384xf32>,
    %8 = vector.extract_strided_slice %3 {offsets = [8, 0], sizes = [32, 384], strides = [1, 1]} : vector<40x384xf32> to vector<32x384xf32>
    %c0_7 = arith.constant 0 : index
    %c0_8 = arith.constant 0 : index
    %c0_9 = arith.constant 0 : index
    %9 = vector.load %arg4[%c0_7, %c0_8, %c0_9] : memref<1x32x384xf32, #tpu.memory_space<vmem>>, vector<1x32x384xf32>
    %10 = vector.shape_cast %9 : vector<1x32x384xf32> to vector<32x384xf32>
    %11 = vector.shape_cast %8 : vector<32x384xf32> to vector<1x32x384xf32>
    tpu.vector_store %arg4[%c0_7, %c0_8, %c0_9], %11 {strides = array<i32>} : memref<1x32x384xf32, #tpu.memory_space<vmem>>, vector<1x32x384xf32>,
    %cst_10 = arith.constant dense<0.000000e+00> : vector<40xf32>
    %12 = vector.multi_reduction <add>, %3, %cst_10 [1] : vector<40x384xf32> to vector<40xf32>
    %13 = vector.shape_cast %12 : vector<40xf32> to vector<40x1xf32>
    %c0_11 = arith.constant 0 : index
    %c0_12 = arith.constant 0 : index
    %c0_13 = arith.constant 0 : index
    %14 = vector.load %arg5[%c0_11, %c0_12, %c0_13] : memref<1x40x1xf32, #tpu.memory_space<vmem>>, vector<1x40x1xf32>
    %15 = vector.shape_cast %14 : vector<1x40x1xf32> to vector<40x1xf32>
    %16 = vector.shape_cast %13 : vector<40x1xf32> to vector<1x40x1xf32>
    tpu.vector_store %arg5[%c0_11, %c0_12, %c0_13], %16 {strides = array<i32>} : memref<1x40x1xf32, #tpu.memory_space<vmem>>, vector<1x40x1xf32>,
    %17 = arith.mulf %3, %3 : vector<40x384xf32>
    %cst_14 = arith.constant dense<0.000000e+00> : vector<40xf32>
    %18 = vector.multi_reduction <add>, %17, %cst_14 [1] : vector<40x384xf32> to vector<40xf32>
    %19 = vector.shape_cast %18 : vector<40xf32> to vector<40x1xf32>
    %c0_15 = arith.constant 0 : index
    %c0_16 = arith.constant 0 : index
    %c0_17 = arith.constant 0 : index
    %20 = vector.load %arg6[%c0_15, %c0_16, %c0_17] : memref<1x40x1xf32, #tpu.memory_space<vmem>>, vector<1x40x1xf32>
    %21 = vector.shape_cast %20 : vector<1x40x1xf32> to vector<40x1xf32>
    %22 = vector.shape_cast %19 : vector<40x1xf32> to vector<1x40x1xf32>
    tpu.vector_store %arg6[%c0_15, %c0_16, %c0_17], %22 {strides = array<i32>} : memref<1x40x1xf32, #tpu.memory_space<vmem>>, vector<1x40x1xf32>,
    return
  }
  func.func @transform_0(%arg0: i32) -> (i32, i32, i32) {
    %c0_i32 = arith.constant 0 : i32
    %c0_i32_0 = arith.constant 0 : i32
    %c0_i32_1 = arith.constant 0 : i32
    return %arg0, %c0_i32, %c0_i32_0 : i32, i32, i32
  }
  func.func @transform_1(%arg0: i32) -> (i32, i32) {
    %c0_i32 = arith.constant 0 : i32
    %c0_i32_0 = arith.constant 0 : i32
    %c0_i32_1 = arith.constant 0 : i32
    return %c0_i32, %c0_i32_0 : i32, i32
  }
  func.func @transform_2(%arg0: i32) -> (i32, i32, i32) {
    %c0_i32 = arith.constant 0 : i32
    %c0_i32_0 = arith.constant 0 : i32
    %c0_i32_1 = arith.constant 0 : i32
    return %arg0, %c0_i32, %c0_i32_0 : i32, i32, i32
  }
  func.func @transform_3(%arg0: i32) -> (i32, i32, i32) {
    %c0_i32 = arith.constant 0 : i32
    %c0_i32_0 = arith.constant 0 : i32
    %c0_i32_1 = arith.constant 0 : i32
    return %arg0, %c0_i32, %c0_i32_0 : i32, i32, i32
  }
  func.func @transform_4(%arg0: i32) -> (i32, i32, i32) {
    %c0_i32 = arith.constant 0 : i32
    %c0_i32_0 = arith.constant 0 : i32
    %c0_i32_1 = arith.constant 0 : i32
    return %arg0, %c0_i32, %c0_i32_0 : i32, i32, i32
  }
  func.func @transform_5(%arg0: i32) -> (i32, i32, i32) {
    %c0_i32 = arith.constant 0 : i32
    %c0_i32_0 = arith.constant 0 : i32
    %c0_i32_1 = arith.constant 0 : i32
    return %arg0, %c0_i32, %c0_i32_0 : i32, i32, i32
  }
}

</mosaic_0001>

<llo_original>
// kernel: tpu_custom_call.1
$region0: #{tpu_custom_call.1}
  #allocation0 [shape = 'u32[]', space=smem, size = 0x4, offset = 0x4, fixed_abs, tag = 'smem constant byte address 0x4 - core index']
  #allocation1 [shape = 'u32[72,128]{1,0:T(1,128)}', space=vmem, size = 0x9000, scoped, tag = 'internal scratch']
  %s0 = inlined_call_operand.vmem [shape: f32[2,8,384], index: 0, kind: input, shape index: {}]
  %s1 = inlined_call_operand.vmem [shape: f32[40,8], index: 1, kind: input, shape index: {}]
  %s2 = inlined_call_operand.hbm [shape: f32[2,8,384], index: 2, kind: output, shape index: {0}]
  %s3 = inlined_call_operand.hbm [shape: f32[2,32,384], index: 3, kind: output, shape index: {1}]
  %s4 = inlined_call_operand.vmem [shape: f32[2,40,1], index: 4, kind: output, shape index: {2}]
  %s5 = inlined_call_operand.vmem [shape: f32[2,40,1], index: 5, kind: output, shape index: {3}]
  %6 = xla_tuple %s2, %s3, %s4, %s5
  %s7 = sld [smem:[#allocation0]]
  $region65: #{tpu_custom_call.1} parent=0
    _
  %s9 = ssub.s32 1, %s7
  %s10 = scalar_select 0, %s9, %s7
  $region1: #{tpu_custom_call.1} parent=0
    #allocation2 [shape = 'u8[24576]{0}', space=vmem, size = 0x6000, scoped, tag = 'output window, operand 0']
    #allocation3 [shape = 's32[2]{0}', space=sflag, size = 0x8, scoped, tag = 'scoped memory for tpu_custom_call.1']
    #allocation4 [shape = 'u8[98304]{0}', space=vmem, size = 0x18000, scoped, tag = 'output window, operand 1']
    #allocation5 [shape = 's32[2]{0}', space=sflag, size = 0x8, scoped, tag = 'scoped memory for tpu_custom_call.1']
    %11 = vsyncpa [#allocation3], 0
    %s12 = scalar_lea.sflag [#allocation3], 1
    %13 = vsyncpa %s12, 0
    %14 = vsyncpa [#allocation5], 0
    %s15 = scalar_lea.sflag [#allocation5], 1
    %16 = vsyncpa %s15, 0
    loop: start=0, step=1, limit=4
    $region2: #{tpu_custom_call.1} parent=1 // loop_pre_header
      _
    $region3: #{tpu_custom_call.1} parent=1 // loop_header
      %s18 = sphi 0, %s22
      %p19 = scmp.ge.s32.totalorder %s18, 4
      %s28 = sphi 0, %s30
      %s31 = sphi 0, %s28
      %s32 = sphi 0, %s31
      %s48 = sphi 0, %s32
      %s52 = sphi 0, %s52
      %s54 = sphi 0, %s52
      %s55 = sphi 0, %s54
      %s69 = sphi 0, %s55
      %s75 = sphi 0, %s77
      %s78 = sphi 0, %s75
      %s79 = sphi 0, %s78
      %s95 = sphi 0, %s79
      %s101 = sphi 0, %s103
      %s104 = sphi 0, %s101
      %s105 = sphi 0, %s104
      %s121 = sphi 0, %s105
      %s127 = sphi 0, %s129
      %s130 = sphi 0, %s127
      %s131 = sphi 0, %s130
      %s147 = sphi 0, %s131
      %s153 = sphi 0, %s155
      %s156 = sphi 0, %s153
      %s157 = sphi 0, %s156
      %s173 = sphi 0, %s157
    $region4: #{tpu_custom_call.1} parent=1 // loop_header_branch
      %21 = sbr.rel (%p19) target = $region8
    $region5: #{tpu_custom_call.1} parent=1 // loop_body
      %s23 = ssub.s32 %s18, 1
      %s24 = ssub.s32 %s18, 2
      %s25 = sadd.s32 %s18, 1
      %s26 = ssub.s32 %s18, %s25
      %p27 = scmp.eq.s32.totalorder %s26, 0
      %s29 = sadd.s32 %s28, 1
      %s30 = scalar_select %p27, %s28, %s29
      %p33 = pneg %p27
      %p34 = scmp.eq.s32.totalorder %s18, 1
      %p35 = por %p33, %p34
      %p36 = scmp.ne.s32.totalorder %s28, %s31
      %p37 = scmp.eq.s32.totalorder %s18, 0
      %p38 = por %p36, %p37
      %p39 = scmp.ne.s32.totalorder %s28, %s31
      %p40 = scmp.eq.s32.totalorder %s23, 1
      %p41 = por %p39, %p40
      %p42 = scmp.ne.s32.totalorder %s31, %s32
      %p43 = scmp.eq.s32.totalorder %s23, 0
      %p44 = por %p42, %p43
      %p45 = scmp.ne.s32.totalorder %s31, %s32
      %p46 = scmp.eq.s32.totalorder %s24, 1
      %p47 = por %p45, %p46
      %p49 = scmp.ne.s32.totalorder %s32, %s48
      %p50 = scmp.eq.s32.totalorder %s24, 0
      %p51 = por %p49, %p50
      %s53 = sadd.s32 %s52, 1
      %p56 = scmp.eq.s32.totalorder %s18, 1
      %p57 = scmp.ne.s32.totalorder %s52, %s54
      %p58 = scmp.eq.s32.totalorder %s18, 0
      %p59 = por %p57, %p58
      %p60 = scmp.ne.s32.totalorder %s52, %s54
      %p61 = scmp.eq.s32.totalorder %s23, 1
      %p62 = por %p60, %p61
      %p63 = scmp.ne.s32.totalorder %s54, %s55
      %p64 = scmp.eq.s32.totalorder %s23, 0
      %p65 = por %p63, %p64
      %p66 = scmp.ne.s32.totalorder %s54, %s55
      %p67 = scmp.eq.s32.totalorder %s24, 1
      %p68 = por %p66, %p67
      %p70 = scmp.ne.s32.totalorder %s55, %s69
      %p71 = scmp.eq.s32.totalorder %s24, 0
      %p72 = por %p70, %p71
      %s73 = ssub.s32 %s18, %s25
      %p74 = scmp.eq.s32.totalorder %s73, 0
      %s76 = sadd.s32 %s75, 1
      %s77 = scalar_select %p74, %s75, %s76
      %p80 = pneg %p74
      %p81 = scmp.eq.s32.totalorder %s18, 1
      %p82 = por %p80, %p81
      %p83 = scmp.ne.s32.totalorder %s75, %s78
      %p84 = scmp.eq.s32.totalorder %s18, 0
      %p85 = por %p83, %p84
      %p86 = scmp.ne.s32.totalorder %s75, %s78
      %p87 = scmp.eq.s32.totalorder %s23, 1
      %p88 = por %p86, %p87
      %p89 = scmp.ne.s32.totalorder %s78, %s79
      %p90 = scmp.eq.s32.totalorder %s23, 0
      %p91 = por %p89, %p90
      %p92 = scmp.ne.s32.totalorder %s78, %s79
      %p93 = scmp.eq.s32.totalorder %s24, 1
      %p94 = por %p92, %p93
      %p96 = scmp.ne.s32.totalorder %s79, %s95
      %p97 = scmp.eq.s32.totalorder %s24, 0
      %p98 = por %p96, %p97
      %s99 = ssub.s32 %s18, %s25
      %p100 = scmp.eq.s32.totalorder %s99, 0
      %s102 = sadd.s32 %s101, 1
      %s103 = scalar_select %p100, %s101, %s102
      %p106 = pneg %p100
      %p107 = scmp.eq.s32.totalorder %s18, 1
      %p108 = por %p106, %p107
      %p109 = scmp.ne.s32.totalorder %s101, %s104
      %p110 = scmp.eq.s32.totalorder %s18, 0
      %p111 = por %p109, %p110
      %p112 = scmp.ne.s32.totalorder %s101, %s104
      %p113 = scmp.eq.s32.totalorder %s23, 1
      %p114 = por %p112, %p113
      %p115 = scmp.ne.s32.totalorder %s104, %s105
      %p116 = scmp.eq.s32.totalorder %s23, 0
      %p117 = por %p115, %p116
      %p118 = scmp.ne.s32.totalorder %s104, %s105
      %p119 = scmp.eq.s32.totalorder %s24, 1
      %p120 = por %p118, %p119
      %p122 = scmp.ne.s32.totalorder %s105, %s121
      %p123 = scmp.eq.s32.totalorder %s24, 0
      %p124 = por %p122, %p123
      %s125 = ssub.s32 %s18, %s25
      %p126 = scmp.eq.s32.totalorder %s125, 0
      %s128 = sadd.s32 %s127, 1
      %s129 = scalar_select %p126, %s127, %s128
      %p132 = pneg %p126
      %p133 = scmp.eq.s32.totalorder %s18, 1
      %p134 = por %p132, %p133
      %p135 = scmp.ne.s32.totalorder %s127, %s130
      %p136 = scmp.eq.s32.totalorder %s18, 0
      %p137 = por %p135, %p136
      %p138 = scmp.ne.s32.totalorder %s127, %s130
      %p139 = scmp.eq.s32.totalorder %s23, 1
      %p140 = por %p138, %p139
      %p141 = scmp.ne.s32.totalorder %s130, %s131
      %p142 = scmp.eq.s32.totalorder %s23, 0
      %p143 = por %p141, %p142
      %p144 = scmp.ne.s32.totalorder %s130, %s131
      %p145 = scmp.eq.s32.totalorder %s24, 1
      %p146 = por %p144, %p145
      %p148 = scmp.ne.s32.totalorder %s131, %s147
      %p149 = scmp.eq.s32.totalorder %s24, 0
      %p150 = por %p148, %p149
      %s151 = ssub.s32 %s18, %s25
      %p152 = scmp.eq.s32.totalorder %s151, 0
      %s154 = sadd.s32 %s153, 1
      %s155 = scalar_select %p152, %s153, %s154
      %p158 = pneg %p152
      %p159 = scmp.eq.s32.totalorder %s18, 1
      %p160 = por %p158, %p159
      %p161 = scmp.ne.s32.totalorder %s153, %s156
      %p162 = scmp.eq.s32.totalorder %s18, 0
      %p163 = por %p161, %p162
      %p164 = scmp.ne.s32.totalorder %s153, %s156
      %p165 = scmp.eq.s32.totalorder %s23, 1
      %p166 = por %p164, %p165
      %p167 = scmp.ne.s32.totalorder %s156, %s157
      %p168 = scmp.eq.s32.totalorder %s23, 0
      %p169 = por %p167, %p168
      %p170 = scmp.ne.s32.totalorder %s156, %s157
      %p171 = scmp.eq.s32.totalorder %s24, 1
      %p172 = por %p170, %p171
      %p174 = scmp.ne.s32.totalorder %s157, %s173
      %p175 = scmp.eq.s32.totalorder %s24, 0
      %p176 = por %p174, %p175
      %p177 = scmp.le.s32.totalorder 1, %s18
      %p178 = scmp.lt.s32.totalorder %s18, 3
      %p179 = pnand %p177, %p178
      %p180 = pneg %p179
      // Predicated region
      $region9: #{tpu_custom_call.1} parent=5 // pred_check
        _
      $region10: #{tpu_custom_call.1} parent=5 // pred_check_branch
        %182 = sbr.rel (%p179) target = $region12
      $region11: #{tpu_custom_call.1} parent=5 // pred_region
        %s183 = ssub.s32 %s18, 1
        // Predicated region
        $region13: #{tpu_custom_call.1} parent=11 // pred_check
          %p184 = pneg %p65
        $region14: #{tpu_custom_call.1} parent=11 // pred_check_branch
          %186 = sbr.rel (%p184) target = $region16
        $region15: #{tpu_custom_call.1} parent=11 // pred_region
          _
        $region16: #{tpu_custom_call.1} parent=11 // pred_fallthru
          _
      $region12: #{tpu_custom_call.1} parent=5 // pred_fallthru
        _
      %p187 = scmp.lt.s32.totalorder %s18, 2
      // Predicated region
      $region17: #{tpu_custom_call.1} parent=5 // pred_check
        %p188 = pneg %p187
      $region18: #{tpu_custom_call.1} parent=5 // pred_check_branch
        %190 = sbr.rel (%p188) target = $region20
      $region19: #{tpu_custom_call.1} parent=5 // pred_region
        // Predicated region
        $region21: #{tpu_custom_call.1} parent=19 // pred_check
          %p191 = pneg %p38
        $region22: #{tpu_custom_call.1} parent=19 // pred_check_branch
          %193 = sbr.rel (%p191) target = $region24
        $region23: #{tpu_custom_call.1} parent=19 // pred_region
          %p194 = scmp.lt.s32.totalorder %s18, 1
          %s195 = scalar_select %p194, %s18, 1
          %s196 = smul.addr %s195, 3
          %s197 = smul.addr %s196, 8
          %s198 = scalar_lea.vmem %s0, %s197
        $region24: #{tpu_custom_call.1} parent=19 // pred_fallthru
          _
      $region20: #{tpu_custom_call.1} parent=5 // pred_fallthru
        _
      %p199 = scmp.le.s32.totalorder 1, %s18
      %p200 = scmp.lt.s32.totalorder %s18, 3
      %p201 = pnand %p199, %p200
      %p202 = pneg %p201
      // Predicated region
      $region25: #{tpu_custom_call.1} parent=5 // pred_check
        _
      $region26: #{tpu_custom_call.1} parent=5 // pred_check_branch
        %204 = sbr.rel (%p201) target = $region28
      $region27: #{tpu_custom_call.1} parent=5 // pred_region
        %s205 = ssub.s32 %s18, 1
        %p206 = scmp.lt.s32.totalorder %s23, 1
        %s207 = scalar_select %p206, %s23, 1
        %s208 = smul.addr %s207, 3
        %s209 = smul.addr %s208, 8
        %s210 = scalar_lea.vmem %s0, %s209
        %p211 = pneg %p44
        %p212 = pneg %p41
        %p213 = pneg %p65
        %p214 = pneg %p62
        %p215 = pneg %p91
        %p216 = pneg %p88
        %s217 = sand.u32 %s78, 1
        %s218 = scalar_lea.sflag [#allocation3], %s217
        %s219 = sand.u32 %s78, 1
        %s220 = smul.addr %s219, 24
        %s221 = scalar_lea.vmem [#allocation2], %s220
        %p222 = pneg %p117
        %p223 = pneg %p114
        %s224 = sand.u32 %s104, 1
        %s225 = scalar_lea.sflag [#allocation5], %s224
        %s226 = sand.u32 %s104, 1
        %s227 = smul.addr %s226, 96
        %s228 = scalar_lea.vmem [#allocation4], %s227
        %p229 = pneg %p143
        %p230 = pneg %p140
        %p231 = scmp.lt.s32.totalorder %s23, 1
        %s232 = scalar_select %p231, %s23, 1
        %s233 = smul.addr %s232, 5
        %s234 = smul.addr %s233, 8
        %s235 = scalar_lea.vmem %s4, %s234
        %p236 = pneg %p169
        %p237 = pneg %p166
        %p238 = scmp.lt.s32.totalorder %s23, 1
        %s239 = scalar_select %p238, %s23, 1
        %s240 = smul.addr %s239, 5
        %s241 = smul.addr %s240, 8
        %s242 = scalar_lea.vmem %s5, %s241
        %p243 = scmp.lt.s32.totalorder %s23, 1
        %s244 = scalar_select %p243, %s23, 1
        %s245 = smul.addr %s244, 3
        %s246 = smul.addr %s245, 8
        %s247 = scalar_lea.vmem %s0, %s246
        %p248 = scmp.lt.s32.totalorder %s23, 1
        %s249 = scalar_select %p248, %s23, 1
        %s250 = smul.addr %s249, 5
        %s251 = smul.addr %s250, 8
        %s252 = scalar_lea.vmem %s4, %s251
        %p253 = scmp.lt.s32.totalorder %s23, 1
        %s254 = scalar_select %p253, %s23, 1
        %s255 = smul.addr %s254, 5
        %s256 = smul.addr %s255, 8
        %s257 = scalar_lea.vmem %s5, %s256
        %v258 = vld [vmem:[%s1] sm:$0xff]
        %v259 = vld [vmem:[%s1 + $0x8] sm:$0xff]
        %v260 = vld [vmem:[%s1 + $0x10] sm:$0xff]
        %v261 = vld [vmem:[%s1 + $0x18] sm:$0xff]
        %v262 = vld [vmem:[%s1 + $0x20] sm:$0xff]
        %v263 = vld [vmem:[%s247] sm:$0xff]
        %v264 = vld [vmem:[%s247 + $0x8] sm:$0xff]
        %v265 = vld [vmem:[%s247 + $0x10] sm:$0xff]
        %vm266 = vcmask 64512
        %v268 = vsel %vm266, %v258, 0
        %v271 = vsel %vm266, %v259, 0
        %v274 = vsel %vm266, %v260, 0
        %v277 = vsel %vm266, %v261, 0
        %v280 = vsel %vm266, %v262, 0
        %282 = vmatpush.msra.mxu0 0.0
        %283 = vmatpush.msra.mxu0 0.0
        %284 = vmatpush.msra.mxu0 0.0
        %285 = vmatpush.msra.mxu0 0.0
        %286 = vmatpush.msra.mxu0 0.0
        %287 = vmatpush.msra.mxu0 0.0
        %288 = vmatpush.msra.mxu0 0.0
        %289 = vmatpush.msra.mxu0 0.0
        %290 = vmatpush.msra.mxu0 0.0
        %291 = vmatpush.msra.mxu0 0.0
        %292 = vmatpush.msra.mxu0 0.0
        %293 = vmatpush.msra.mxu0 0.0
        %294 = vmatpush.msra.mxu0 0.0
        %295 = vmatpush.msra.mxu0 0.0
        %296 = vmatpush.msra.mxu0 0.0
        %297 = vmatpush.msra.mxu0 %v263
        %298 = vmatmul.f32.gmra.mxu0 %v268
        %v299 = vpop.f32.mrf.mxu0
        %v300 = vadd.f32 0.0, %v299
        %301 = vmatmul.f32.gmra.mxu0 %v271
        %v302 = vpop.f32.mrf.mxu0
        %v303 = vadd.f32 0.0, %v302
        %304 = vmatmul.f32.gmra.mxu0 %v274
        %v305 = vpop.f32.mrf.mxu0
        %v306 = vadd.f32 0.0, %v305
        %307 = vmatmul.f32.gmra.mxu0 %v277
        %v308 = vpop.f32.mrf.mxu0
        %v309 = vadd.f32 0.0, %v308
        %310 = vmatmul.f32.gmra.mxu0 %v280
        %v311 = vpop.f32.mrf.mxu0
        %v312 = vadd.f32 0.0, %v311
        %313 = vdwg.mxu0
        %314 = vmatpush.msra.mxu0 0.0
        %315 = vmatpush.msra.mxu0 0.0
        %316 = vmatpush.msra.mxu0 0.0
        %317 = vmatpush.msra.mxu0 0.0
        %318 = vmatpush.msra.mxu0 0.0
        %319 = vmatpush.msra.mxu0 0.0
        %320 = vmatpush.msra.mxu0 0.0
        %321 = vmatpush.msra.mxu0 0.0
        %322 = vmatpush.msra.mxu0 0.0
        %323 = vmatpush.msra.mxu0 0.0
        %324 = vmatpush.msra.mxu0 0.0
        %325 = vmatpush.msra.mxu0 0.0
        %326 = vmatpush.msra.mxu0 0.0
        %327 = vmatpush.msra.mxu0 0.0
        %328 = vmatpush.msra.mxu0 0.0
        %329 = vmatpush.msra.mxu0 %v264
        %330 = vmatmul.f32.gmra.mxu0 %v268
        %v331 = vpop.f32.mrf.mxu0
        %v332 = vadd.f32 0.0, %v331
        %333 = vmatmul.f32.gmra.mxu0 %v271
        %v334 = vpop.f32.mrf.mxu0
        %v335 = vadd.f32 0.0, %v334
        %336 = vmatmul.f32.gmra.mxu0 %v274
        %v337 = vpop.f32.mrf.mxu0
        %v338 = vadd.f32 0.0, %v337
        %339 = vmatmul.f32.gmra.mxu0 %v277
        %v340 = vpop.f32.mrf.mxu0
        %v341 = vadd.f32 0.0, %v340
        %342 = vmatmul.f32.gmra.mxu0 %v280
        %v343 = vpop.f32.mrf.mxu0
        %v344 = vadd.f32 0.0, %v343
        %345 = vdwg.mxu0
        %346 = vmatpush.msra.mxu0 0.0
        %347 = vmatpush.msra.mxu0 0.0
        %348 = vmatpush.msra.mxu0 0.0
        %349 = vmatpush.msra.mxu0 0.0
        %350 = vmatpush.msra.mxu0 0.0
        %351 = vmatpush.msra.mxu0 0.0
        %352 = vmatpush.msra.mxu0 0.0
        %353 = vmatpush.msra.mxu0 0.0
        %354 = vmatpush.msra.mxu0 0.0
        %355 = vmatpush.msra.mxu0 0.0
        %356 = vmatpush.msra.mxu0 0.0
        %357 = vmatpush.msra.mxu0 0.0
        %358 = vmatpush.msra.mxu0 0.0
        %359 = vmatpush.msra.mxu0 0.0
        %360 = vmatpush.msra.mxu0 0.0
        %361 = vmatpush.msra.mxu0 %v265
        %362 = vmatmul.f32.gmra.mxu0 %v268
        %v363 = vpop.f32.mrf.mxu0
        %v364 = vadd.f32 0.0, %v363
        %365 = vmatmul.f32.gmra.mxu0 %v271
        %v366 = vpop.f32.mrf.mxu0
        %v367 = vadd.f32 0.0, %v366
        %368 = vmatmul.f32.gmra.mxu0 %v274
        %v369 = vpop.f32.mrf.mxu0
        %v370 = vadd.f32 0.0, %v369
        %371 = vmatmul.f32.gmra.mxu0 %v277
        %v372 = vpop.f32.mrf.mxu0
        %v373 = vadd.f32 0.0, %v372
        %374 = vmatmul.f32.gmra.mxu0 %v280
        %v375 = vpop.f32.mrf.mxu0
        %v376 = vadd.f32 0.0, %v375
        %377 = vdwg.mxu0
        %378 = vst [vmem:[%s221] sm:$0xff] %v300
        %379 = vst [vmem:[%s221 + $0x8] sm:$0xff] %v332
        %380 = vst [vmem:[%s221 + $0x10] sm:$0xff] %v364
        %381 = vst [vmem:[%s228] sm:$0xff] %v303
        %382 = vst [vmem:[%s228 + $0x8] sm:$0xff] %v335
        %383 = vst [vmem:[%s228 + $0x10] sm:$0xff] %v367
        %384 = vst [vmem:[%s228 + $0x18] sm:$0xff] %v306
        %385 = vst [vmem:[%s228 + $0x20] sm:$0xff] %v338
        %386 = vst [vmem:[%s228 + $0x28] sm:$0xff] %v370
        %387 = vst [vmem:[%s228 + $0x30] sm:$0xff] %v309
        %388 = vst [vmem:[%s228 + $0x38] sm:$0xff] %v341
        %389 = vst [vmem:[%s228 + $0x40] sm:$0xff] %v373
        %390 = vst [vmem:[%s228 + $0x48] sm:$0xff] %v312
        %391 = vst [vmem:[%s228 + $0x50] sm:$0xff] %v344
        %392 = vst [vmem:[%s228 + $0x58] sm:$0xff] %v376
        %v393 = vadd.f32 %v300, %v332
        %v394 = vadd.f32 %v393, %v364
        %395 = vadd.xlane.f32.xlu0 %v394
        %v396 = vpop.xlane.xlu0 %395
        %v397 = vadd.f32 %v303, %v335
        %v398 = vadd.f32 %v397, %v367
        %399 = vadd.xlane.f32.xlu0 %v398
        %v400 = vpop.xlane.xlu0 %399
        %v401 = vadd.f32 %v306, %v338
        %v402 = vadd.f32 %v401, %v370
        %403 = vadd.xlane.f32.xlu0 %v402
        %v404 = vpop.xlane.xlu0 %403
        %v405 = vadd.f32 %v309, %v341
        %v406 = vadd.f32 %v405, %v373
        %407 = vadd.xlane.f32.xlu0 %v406
        %v408 = vpop.xlane.xlu0 %407
        %v409 = vadd.f32 %v312, %v344
        %v410 = vadd.f32 %v409, %v376
        %411 = vadd.xlane.f32.xlu0 %v410
        %v412 = vpop.xlane.xlu0 %411
        %vm413 = vcmask 7168
        %414 = vst.msk [vmem:[%s252] sm:$0xff] %vm413, %v396
        %415 = vst.msk [vmem:[%s252 + $0x8] sm:$0xff] %vm413, %v400
        %416 = vst.msk [vmem:[%s252 + $0x10] sm:$0xff] %vm413, %v404
        %417 = vst.msk [vmem:[%s252 + $0x18] sm:$0xff] %vm413, %v408
        %418 = vst.msk [vmem:[%s252 + $0x20] sm:$0xff] %vm413, %v412
        %v419 = vmul.f32 %v300, %v300
        %v420 = vmul.f32 %v332, %v332
        %v421 = vmul.f32 %v364, %v364
        %v422 = vmul.f32 %v303, %v303
        %v423 = vmul.f32 %v335, %v335
        %v424 = vmul.f32 %v367, %v367
        %v425 = vmul.f32 %v306, %v306
        %v426 = vmul.f32 %v338, %v338
        %v427 = vmul.f32 %v370, %v370
        %v428 = vmul.f32 %v309, %v309
        %v429 = vmul.f32 %v341, %v341
        %v430 = vmul.f32 %v373, %v373
        %v431 = vmul.f32 %v312, %v312
        %v432 = vmul.f32 %v344, %v344
        %v433 = vmul.f32 %v376, %v376
        %v434 = vadd.f32 %v419, %v420
        %v435 = vadd.f32 %v434, %v421
        %436 = vadd.xlane.f32.xlu0 %v435
        %v437 = vpop.xlane.xlu0 %436
        %v438 = vadd.f32 %v422, %v423
        %v439 = vadd.f32 %v438, %v424
        %440 = vadd.xlane.f32.xlu0 %v439
        %v441 = vpop.xlane.xlu0 %440
        %v442 = vadd.f32 %v425, %v426
        %v443 = vadd.f32 %v442, %v427
        %444 = vadd.xlane.f32.xlu0 %v443
        %v445 = vpop.xlane.xlu0 %444
        %v446 = vadd.f32 %v428, %v429
        %v447 = vadd.f32 %v446, %v430
        %448 = vadd.xlane.f32.xlu0 %v447
        %v449 = vpop.xlane.xlu0 %448
        %v450 = vadd.f32 %v431, %v432
        %v451 = vadd.f32 %v450, %v433
        %452 = vadd.xlane.f32.xlu0 %v451
        %v453 = vpop.xlane.xlu0 %452
        %454 = vst.msk [vmem:[%s257] sm:$0xff] %vm413, %v437
        %455 = vst.msk [vmem:[%s257 + $0x8] sm:$0xff] %vm413, %v441
        %456 = vst.msk [vmem:[%s257 + $0x10] sm:$0xff] %vm413, %v445
        %457 = vst.msk [vmem:[%s257 + $0x18] sm:$0xff] %vm413, %v449
        %458 = vst.msk [vmem:[%s257 + $0x20] sm:$0xff] %vm413, %v453
        %s459 = sand.u32 %s78, 1
        %s460 = scalar_lea.sflag [#allocation3], %s459
        %s461 = sand.u32 %s78, 1
        %s462 = smul.addr %s461, 24
        %s463 = scalar_lea.vmem [#allocation2], %s462
        %s464 = sand.u32 %s104, 1
        %s465 = scalar_lea.sflag [#allocation5], %s464
        %s466 = sand.u32 %s104, 1
        %s467 = smul.addr %s466, 96
        %s468 = scalar_lea.vmem [#allocation4], %s467
        %p469 = scmp.lt.s32.totalorder %s23, 1
        %s470 = scalar_select %p469, %s23, 1
        %s471 = smul.addr %s470, 5
        %s472 = smul.addr %s471, 8
        %s473 = scalar_lea.vmem %s4, %s472
        %p474 = scmp.lt.s32.totalorder %s23, 1
        %s475 = scalar_select %p474, %s23, 1
        %s476 = smul.addr %s475, 5
        %s477 = smul.addr %s476, 8
        %s478 = scalar_lea.vmem %s5, %s477
        // Predicated region
        $region29: #{tpu_custom_call.1} parent=27 // pred_check
          %p479 = pneg %p88
        $region30: #{tpu_custom_call.1} parent=27 // pred_check_branch
          %481 = sbr.rel (%p479) target = $region32
        $region31: #{tpu_custom_call.1} parent=27 // pred_region
          %483 = vsyncadd %s460, 0
          %s484 = smul.addr %s23, 3
          %s485 = smul.addr %s484, 8
          %s486 = scalar_lea.hbm %s2, %s485
          %s488 = sshll.u32 %s463, 4
          %s489 = int_to_ptr.vmem [resolvable:$true] %s488
          %s490 = sshll.u32 %s486, 4
          %s491 = int_to_ptr.hbm [resolvable:$true] %s490
          %493 = dma.vmem_to_hbm [thread:$0]  %s489, 384, %s491, %s460
        $region32: #{tpu_custom_call.1} parent=27 // pred_fallthru
          _
        // Predicated region
        $region33: #{tpu_custom_call.1} parent=27 // pred_check
          %p494 = pneg %p114
        $region34: #{tpu_custom_call.1} parent=27 // pred_check_branch
          %496 = sbr.rel (%p494) target = $region36
        $region35: #{tpu_custom_call.1} parent=27 // pred_region
          %498 = vsyncadd %s465, 0
          %s499 = smul.addr %s23, 12
          %s500 = smul.addr %s499, 8
          %s501 = scalar_lea.hbm %s3, %s500
          %s502 = sshll.u32 %s468, 4
          %s503 = int_to_ptr.vmem [resolvable:$true] %s502
          %s504 = sshll.u32 %s501, 4
          %s505 = int_to_ptr.hbm [resolvable:$true] %s504
          %510 = dma.vmem_to_hbm [thread:$0]  %s503, 1536, %s505, %s465, 384, 384, 24
        $region36: #{tpu_custom_call.1} parent=27 // pred_fallthru
          _
        // Predicated region
        $region37: #{tpu_custom_call.1} parent=27 // pred_check
          %p511 = pneg %p140
        $region38: #{tpu_custom_call.1} parent=27 // pred_check_branch
          %513 = sbr.rel (%p511) target = $region40
        $region39: #{tpu_custom_call.1} parent=27 // pred_region
          _
        $region40: #{tpu_custom_call.1} parent=27 // pred_fallthru
          _
        // Predicated region
        $region41: #{tpu_custom_call.1} parent=27 // pred_check
          %p514 = pneg %p166
        $region42: #{tpu_custom_call.1} parent=27 // pred_check_branch
          %516 = sbr.rel (%p514) target = $region44
        $region43: #{tpu_custom_call.1} parent=27 // pred_region
          _
        $region44: #{tpu_custom_call.1} parent=27 // pred_fallthru
          _
      $region28: #{tpu_custom_call.1} parent=5 // pred_fallthru
        _
      %p517 = scmp.le.s32.totalorder 2, %s18
      // Predicated region
      $region45: #{tpu_custom_call.1} parent=5 // pred_check
        %p518 = pneg %p517
      $region46: #{tpu_custom_call.1} parent=5 // pred_check_branch
        %520 = sbr.rel (%p518) target = $region48
      $region47: #{tpu_custom_call.1} parent=5 // pred_region
        %s521 = ssub.s32 %s18, 2
        // Predicated region
        $region49: #{tpu_custom_call.1} parent=47 // pred_check
          %p522 = pneg %p94
        $region50: #{tpu_custom_call.1} parent=47 // pred_check_branch
          %524 = sbr.rel (%p522) target = $region52
        $region51: #{tpu_custom_call.1} parent=47 // pred_region
          %s525 = sand.u32 %s79, 1
          %s526 = scalar_lea.sflag [#allocation3], %s525
          %s527 = sand.u32 %s79, 1
          %s528 = smul.addr %s527, 24
          %s529 = scalar_lea.vmem [#allocation2], %s528
          %531 = dma.done %s526, 384
        $region52: #{tpu_custom_call.1} parent=47 // pred_fallthru
          _
        // Predicated region
        $region53: #{tpu_custom_call.1} parent=47 // pred_check
          %p532 = pneg %p120
        $region54: #{tpu_custom_call.1} parent=47 // pred_check_branch
          %534 = sbr.rel (%p532) target = $region56
        $region55: #{tpu_custom_call.1} parent=47 // pred_region
          %s535 = sand.u32 %s105, 1
          %s536 = scalar_lea.sflag [#allocation5], %s535
          %s537 = sand.u32 %s105, 1
          %s538 = smul.addr %s537, 96
          %s539 = scalar_lea.vmem [#allocation4], %s538
          %541 = dma.done %s536, 1536
        $region56: #{tpu_custom_call.1} parent=47 // pred_fallthru
          _
        // Predicated region
        $region57: #{tpu_custom_call.1} parent=47 // pred_check
          %p542 = pneg %p146
        $region58: #{tpu_custom_call.1} parent=47 // pred_check_branch
          %544 = sbr.rel (%p542) target = $region60
        $region59: #{tpu_custom_call.1} parent=47 // pred_region
          %p545 = scmp.lt.s32.totalorder %s24, 1
          %s546 = scalar_select %p545, %s24, 1
          %s547 = smul.addr %s546, 5
          %s548 = smul.addr %s547, 8
          %s549 = scalar_lea.vmem %s4, %s548
        $region60: #{tpu_custom_call.1} parent=47 // pred_fallthru
          _
        // Predicated region
        $region61: #{tpu_custom_call.1} parent=47 // pred_check
          %p550 = pneg %p172
        $region62: #{tpu_custom_call.1} parent=47 // pred_check_branch
          %552 = sbr.rel (%p550) target = $region64
        $region63: #{tpu_custom_call.1} parent=47 // pred_region
          %p553 = scmp.lt.s32.totalorder %s24, 1
          %s554 = scalar_select %p553, %s24, 1
          %s555 = smul.addr %s554, 5
          %s556 = smul.addr %s555, 8
          %s557 = scalar_lea.vmem %s5, %s556
        $region64: #{tpu_custom_call.1} parent=47 // pred_fallthru
          _
      $region48: #{tpu_custom_call.1} parent=5 // pred_fallthru
        _
    $region6: #{tpu_custom_call.1} parent=1 // loop_footer
      %s22 = sadd.s32 1, %s18
    $region7: #{tpu_custom_call.1} parent=1 // loop_footer_branch
      %17 = sbr.rel target = $region3
    $region8: #{tpu_custom_call.1} parent=1 // loop_exit
      _
    %558 = vsyncpa [#allocation3], 1
    %s559 = scalar_lea.sflag [#allocation3], 1
    %560 = vsyncpa %s559, 1
    %561 = vsyncpa [#allocation5], 1
    %s562 = scalar_lea.sflag [#allocation5], 1
    %563 = vsyncpa %s562, 1

</llo_original>
